<compile_context>
chip_gen: v7x
topology: tpu7x:2x2x1
jax: 0.10.0
libtpu: 0.0.40
codegen_flags: <defaults>
</compile_context>

<pallas_src>
import functools

import jax
import jax.numpy as jnp
from jax import lax
from jax.experimental import pallas as pl
from jax.experimental.pallas import tpu as pltpu

MARGIN = 0.2
EPS = 1e-6  # PairwiseDistance default eps


def _round_up(x, m):
    return ((x + m - 1) // m) * m


def _triplet_hinge_kernel(a_ref, p_ref, n_ref, out_ref, *, margin, batch):
    rows = a_ref.shape[0]      # row-block size (static)
    out_w = out_ref.shape[1]   # lane-dense output width (static, multiple of 128)

    # Upcast so math is f32 even for bf16 embeddings.
    a = a_ref[...].astype(jnp.float32)
    p = p_ref[...].astype(jnp.float32)
    n = n_ref[...].astype(jnp.float32)

    # PairwiseDistance(p=2): sqrt(sum((x1 - x2 + eps)^2, dim=1))
    dp = a - p + EPS
    dn = a - n + EPS
    pos_dist = jnp.sqrt(jnp.sum(dp * dp, axis=1))   # (rows,)
    neg_dist = jnp.sqrt(jnp.sum(dn * dn, axis=1))   # (rows,)

    hinge = jnp.maximum(margin + pos_dist - neg_dist, 0.0)   # clamp(min=0)

    if rows == out_w:
        # 128-aligned / multi-block path: zero lanes past the true batch (the
        # ragged last block reads garbage rows past B), then store lane-dense.
        lane = lax.broadcasted_iota(jnp.int32, (1, out_w), 1)
        valid = (pl.program_id(0) * out_w + lane) < batch
        out_ref[...] = jnp.where(valid, hinge.reshape(1, out_w), 0.0)
    else:
        # Single small block (B < 128): the input block covers exactly the B
        # valid rows; zero-fill the 128-wide output slab, write valid lanes.
        out_ref[...] = jnp.zeros((1, out_w), dtype=jnp.float32)
        out_ref[0:1, 0:rows] = hinge.reshape(1, rows)


def triplet_loss(anchor, pos, neg, margin=MARGIN, tile_b=None):
    """anchor, pos, neg: [B, D] f32/bf16 embeddings. Returns scalar f32 loss."""
    B, D = anchor.shape
    assert pos.shape == (B, D) and neg.shape == (B, D)

    itemsize = jnp.dtype(anchor.dtype).itemsize
    if tile_b is None:
        if B <= 128:
            tile_b = B                       # single full-array block
        else:
            # >= 2 blocks (both v7x TCs stream); multiple of 128 so row tiles
            # satisfy (8,128)/(16,128) and the output block stays lane-dense.
            cap = 8192 if itemsize <= 2 else 4096
            tile_b = min(cap, max(128, _round_up(pl.cdiv(B, 2), 128)))
    assert tile_b == B or tile_b % 128 == 0, "tile_b must equal B or be a multiple of 128"

    num_blocks = pl.cdiv(B, tile_b)
    out_w = _round_up(max(tile_b, 128), 128)   # lane width of each output block
    b_out = num_blocks * out_w                 # padded output lane dim

    emb_spec = pl.BlockSpec((tile_b, D), lambda i: (i, 0))
    out_spec = pl.BlockSpec((1, out_w), lambda i: (0, i))

    # Explicit scoped-VMEM budget: double-buffered inputs + output + headroom.
    footprint = 3 * 2 * tile_b * D * itemsize + 2 * out_w * 4
    vmem_limit = int(min(max(footprint + (8 << 20), 24 << 20), 100 << 20))

    cost = pl.CostEstimate(
        flops=8 * B * D,
        transcendentals=2 * B,
        bytes_accessed=3 * B * D * itemsize + b_out * 4,
    )

    kernel = functools.partial(_triplet_hinge_kernel, margin=margin, batch=B)

    hinge = pl.pallas_call(
        kernel,
        out_shape=jax.ShapeDtypeStruct((1, b_out), jnp.float32),
        grid_spec=pltpu.PrefetchScalarGridSpec(
            num_scalar_prefetch=0,
            grid=(num_blocks,),
            in_specs=[emb_spec, emb_spec, emb_spec],
            out_specs=out_spec,
        ),
        compiler_params=pltpu.CompilerParams(
            dimension_semantics=("parallel",),
            vmem_limit_bytes=vmem_limit,
        ),
        cost_estimate=cost,
    )(anchor, pos, neg)

    # Padded / ragged lanes were zeroed in-kernel: sum and divide by true B.
    return jnp.sum(hinge) / B


def _l2_normalize(x, axis=1, eps=1e-12):
    # mimic F.normalize(embedding, p=2, dim=1) that FaceNet applies
    norm = jnp.sqrt(jnp.sum(x * x, axis=axis, keepdims=True))
    return x / jnp.maximum(norm, eps)


def _reference_loss(a, p, n, margin):
    pd = jnp.sqrt(jnp.sum((a - p + EPS) ** 2, axis=1))
    nd = jnp.sqrt(jnp.sum((a - n + EPS) ** 2, axis=1))
    return jnp.mean(jnp.maximum(margin + pd - nd, 0.0))


if __name__ == "__main__":
    key = jax.random.PRNGKey(0)

    # --- Case 1: the FaceNet regime (batch 32, embedding_dim 128) ------------
    B, D = 32, 128
    ka, kp, kn, key = jax.random.split(key, 4)
    anchor = _l2_normalize(jax.random.normal(ka, (B, D), dtype=jnp.float32))
    pos = _l2_normalize(jax.random.normal(kp, (B, D), dtype=jnp.float32))
    neg = _l2_normalize(jax.random.normal(kn, (B, D), dtype=jnp.float32))

    loss = triplet_loss(anchor, pos, neg, margin=MARGIN)
    jax.block_until_ready(loss)
    ref = _reference_loss(anchor, pos, neg, MARGIN)
    assert jnp.allclose(loss, ref, rtol=1e-5, atol=1e-6), (loss, ref)

    # --- Case 2: ragged multi-block path (2 blocks, ragged tail, no jnp.pad) --
    B2, D2 = 160, 128
    ka2, kp2, kn2, key = jax.random.split(key, 4)
    a2 = _l2_normalize(jax.random.normal(ka2, (B2, D2), dtype=jnp.float32))
    p2 = _l2_normalize(jax.random.normal(kp2, (B2, D2), dtype=jnp.float32))
    n2 = _l2_normalize(jax.random.normal(kn2, (B2, D2), dtype=jnp.float32))

    loss2 = triplet_loss(a2, p2, n2, margin=MARGIN)
    jax.block_until_ready(loss2)
    ref2 = _reference_loss(a2, p2, n2, MARGIN)
    assert jnp.allclose(loss2, ref2, rtol=1e-5, atol=1e-6), (loss2, ref2)

    print("KERNEL_OK")
</pallas_src>

<mosaic_0001>
module attributes {stable_mosaic.version = 11 : i64} {
  func.func @_triplet_hinge_kernel(%arg0: i32, %arg1: memref<32x128xf32, #tpu.memory_space<vmem>>, %arg2: memref<32x128xf32, #tpu.memory_space<vmem>>, %arg3: memref<32x128xf32, #tpu.memory_space<vmem>>, %arg4: memref<1x128xf32, #tpu.memory_space<vmem>>) attributes {dimension_semantics = [#tpu.dimension_semantics<parallel>], iteration_bounds = array<i64: 1>, scalar_prefetch = 0 : i64, scratch_operands = 0 : i64, tpu.core_type = #tpu.core_type<tc>, window_params = [{transform_indices = @transform_0, window_bounds = array<i64: 32, 128>}, {transform_indices = @transform_1, window_bounds = array<i64: 32, 128>}, {transform_indices = @transform_2, window_bounds = array<i64: 32, 128>}, {transform_indices = @transform_3, window_bounds = array<i64: 1, 128>}]} {
    %c0 = arith.constant 0 : index
    %c0_0 = arith.constant 0 : index
    %0 = vector.load %arg1[%c0, %c0_0] : memref<32x128xf32, #tpu.memory_space<vmem>>, vector<32x128xf32>
    %c0_1 = arith.constant 0 : index
    %c0_2 = arith.constant 0 : index
    %1 = vector.load %arg2[%c0_1, %c0_2] : memref<32x128xf32, #tpu.memory_space<vmem>>, vector<32x128xf32>
    %c0_3 = arith.constant 0 : index
    %c0_4 = arith.constant 0 : index
    %2 = vector.load %arg3[%c0_3, %c0_4] : memref<32x128xf32, #tpu.memory_space<vmem>>, vector<32x128xf32>
    %3 = arith.subf %0, %1 : vector<32x128xf32>
    %cst = arith.constant 9.99999997E-7 : f32
    %4 = vector.broadcast %cst : f32 to vector<32x128xf32>
    %5 = arith.addf %3, %4 : vector<32x128xf32>
    %6 = arith.subf %0, %2 : vector<32x128xf32>
    %cst_5 = arith.constant 9.99999997E-7 : f32
    %7 = vector.broadcast %cst_5 : f32 to vector<32x128xf32>
    %8 = arith.addf %6, %7 : vector<32x128xf32>
    %9 = arith.mulf %5, %5 : vector<32x128xf32>
    %cst_6 = arith.constant dense<0.000000e+00> : vector<32xf32>
    %10 = vector.multi_reduction <add>, %9, %cst_6 [1] : vector<32x128xf32> to vector<32xf32>
    %11 = math.sqrt %10 : vector<32xf32>
    %12 = arith.mulf %8, %8 : vector<32x128xf32>
    %cst_7 = arith.constant dense<0.000000e+00> : vector<32xf32>
    %13 = vector.multi_reduction <add>, %12, %cst_7 [1] : vector<32x128xf32> to vector<32xf32>
    %14 = math.sqrt %13 : vector<32xf32>
    %cst_8 = arith.constant 2.000000e-01 : f32
    %15 = vector.broadcast %cst_8 : f32 to vector<32xf32>
    %16 = arith.addf %15, %11 : vector<32xf32>
    %17 = arith.subf %16, %14 : vector<32xf32>
    %cst_9 = arith.constant 0.000000e+00 : f32
    %18 = vector.broadcast %cst_9 : f32 to vector<32xf32>
    %19 = arith.maximumf %17, %18 : vector<32xf32>
    %cst_10 = arith.constant 0.000000e+00 : f32
    %20 = vector.broadcast %cst_10 : f32 to vector<1x128xf32>
    %c0_11 = arith.constant 0 : index
    %c0_12 = arith.constant 0 : index
    %21 = vector.load %arg4[%c0_11, %c0_12] : memref<1x128xf32, #tpu.memory_space<vmem>>, vector<1x128xf32>
    tpu.vector_store %arg4[%c0_11, %c0_12], %20 {strides = array<i32>} : memref<1x128xf32, #tpu.memory_space<vmem>>, vector<1x128xf32>,
    %22 = vector.shape_cast %19 : vector<32xf32> to vector<1x32xf32>
    %c0_13 = arith.constant 0 : index
    %c0_14 = arith.constant 0 : index
    %23 = vector.load %arg4[%c0_13, %c0_14] : memref<1x128xf32, #tpu.memory_space<vmem>>, vector<1x32xf32>
    tpu.vector_store %arg4[%c0_13, %c0_14], %22 {strides = array<i32>} : memref<1x128xf32, #tpu.memory_space<vmem>>, vector<1x32xf32>,
    return
  }
  func.func @transform_0(%arg0: i32) -> (i32, i32) {
    %c0_i32 = arith.constant 0 : i32
    %c0_i32_0 = arith.constant 0 : i32
    return %arg0, %c0_i32 : i32, i32
  }
  func.func @transform_1(%arg0: i32) -> (i32, i32) {
    %c0_i32 = arith.constant 0 : i32
    %c0_i32_0 = arith.constant 0 : i32
    return %arg0, %c0_i32 : i32, i32
  }
  func.func @transform_2(%arg0: i32) -> (i32, i32) {
    %c0_i32 = arith.constant 0 : i32
    %c0_i32_0 = arith.constant 0 : i32
    return %arg0, %c0_i32 : i32, i32
  }
  func.func @transform_3(%arg0: i32) -> (i32, i32) {
    %c0_i32 = arith.constant 0 : i32
    %c0_i32_0 = arith.constant 0 : i32
    return %c0_i32, %arg0 : i32, i32
  }
}

</mosaic_0001>

<llo_original>
// kernel: tpu_custom_call.1
$region0: #{tpu_custom_call.1}
  #allocation0 [shape = 'u32[]', space=smem, size = 0x4, offset = 0x4, fixed_abs, tag = 'smem constant byte address 0x4 - core index']
  #allocation1 [shape = 'u32[144,128]{1,0:T(1,128)}', space=vmem, size = 0x12000, scoped, tag = 'internal scratch']
  %s0 = inlined_call_operand.hbm [shape: f32[32,128], index: 0, kind: input, shape index: {}]
  %s1 = inlined_call_operand.hbm [shape: f32[32,128], index: 1, kind: input, shape index: {}]
  %s2 = inlined_call_operand.hbm [shape: f32[32,128], index: 2, kind: input, shape index: {}]
  %s3 = inlined_call_operand.hbm [shape: f32[1,128], index: 3, kind: output, shape index: {}]
  %s4 = sld [smem:[#allocation0]]
  $region34: #{tpu_custom_call.1} parent=0
    _
  %s6 = ssub.s32 1, %s4
  %s7 = scalar_select 0, %s6, %s4
  $region1: #{tpu_custom_call.1} parent=0
    #allocation2 [shape = 'u8[16384]{0}', space=vmem, size = 0x4000, scoped, tag = 'input window, operand 0, single buffered']
    #allocation3 [shape = 's32[1]{0}', space=sflag, size = 0x4, scoped, tag = 'scoped memory for tpu_custom_call.1']
    #allocation4 [shape = 's32[1]{0}', space=sflag, size = 0x4, scoped, tag = 'scoped memory for tpu_custom_call.1']
    #allocation5 [shape = 'u8[16384]{0}', space=vmem, size = 0x4000, scoped, tag = 'input window, operand 1, single buffered']
    #allocation6 [shape = 's32[1]{0}', space=sflag, size = 0x4, scoped, tag = 'scoped memory for tpu_custom_call.1']
    #allocation7 [shape = 'u8[16384]{0}', space=vmem, size = 0x4000, scoped, tag = 'input window, operand 2, single buffered']
    #allocation8 [shape = 'u8[512]{0}', space=vmem, size = 0x400, scoped, tag = 'output window, operand 0, single buffered']
    %8 = vsyncpa [#allocation3], 0
    %9 = vsyncpa [#allocation6], 0
    %10 = vsyncpa [#allocation4], 0
    // Predicated region
    $region2: #{tpu_custom_call.1} parent=1 // pred_check
      _
    $region3: #{tpu_custom_call.1} parent=1 // pred_check_branch
      %12 = sbr.rel (0) target = $region5
    $region4: #{tpu_custom_call.1} parent=1 // pred_region
      %s14 = ssub.s32 512, 512
      %15 = vsyncadd [#allocation3], %s14
      %s16 = sshll.u32 [#allocation2], 4
      %s17 = int_to_ptr.vmem [resolvable:$true] %s16
      %22 = dma.hbm_to_vmem [thread:$0]  %s0, 512, %s17, [#allocation3], 128, 128, 8
    $region5: #{tpu_custom_call.1} parent=1 // pred_fallthru
      _
    // Predicated region
    $region6: #{tpu_custom_call.1} parent=1 // pred_check
      _
    $region7: #{tpu_custom_call.1} parent=1 // pred_check_branch
      %24 = sbr.rel (0) target = $region9
    $region8: #{tpu_custom_call.1} parent=1 // pred_region
      %s26 = ssub.s32 512, 512
      %27 = vsyncadd [#allocation6], %s26
      %s28 = sshll.u32 [#allocation5], 4
      %s29 = int_to_ptr.vmem [resolvable:$true] %s28
      %34 = dma.hbm_to_vmem [thread:$0]  %s1, 512, %s29, [#allocation6], 128, 128, 8
    $region9: #{tpu_custom_call.1} parent=1 // pred_fallthru
      _
    // Predicated region
    $region10: #{tpu_custom_call.1} parent=1 // pred_check
      _
    $region11: #{tpu_custom_call.1} parent=1 // pred_check_branch
      %36 = sbr.rel (0) target = $region13
    $region12: #{tpu_custom_call.1} parent=1 // pred_region
      %s38 = ssub.s32 512, 512
      %39 = vsyncadd [#allocation6], %s38
      %s40 = sshll.u32 [#allocation7], 4
      %s41 = int_to_ptr.vmem [resolvable:$true] %s40
      %46 = dma.hbm_to_vmem [thread:$0]  %s2, 512, %s41, [#allocation6], 128, 128, 8
    $region13: #{tpu_custom_call.1} parent=1 // pred_fallthru
      _
    // Predicated region
    $region14: #{tpu_custom_call.1} parent=1 // pred_check
      _
    $region15: #{tpu_custom_call.1} parent=1 // pred_check_branch
      %48 = sbr.rel (0) target = $region17
    $region16: #{tpu_custom_call.1} parent=1 // pred_region
      %49 = dma.done [#allocation3], 512
    $region17: #{tpu_custom_call.1} parent=1 // pred_fallthru
      _
    // Predicated region
    $region18: #{tpu_custom_call.1} parent=1 // pred_check
      _
    $region19: #{tpu_custom_call.1} parent=1 // pred_check_branch
      %51 = sbr.rel (0) target = $region21
    $region20: #{tpu_custom_call.1} parent=1 // pred_region
      %52 = dma.done [#allocation6], 512
    $region21: #{tpu_custom_call.1} parent=1 // pred_fallthru
      _
    // Predicated region
    $region22: #{tpu_custom_call.1} parent=1 // pred_check
      _
    $region23: #{tpu_custom_call.1} parent=1 // pred_check_branch
      %54 = sbr.rel (0) target = $region25
    $region24: #{tpu_custom_call.1} parent=1 // pred_region
      %55 = dma.done [#allocation6], 512
    $region25: #{tpu_custom_call.1} parent=1 // pred_fallthru
      _
    %v56 = vld [vmem:[#allocation2] sm:$0xff]
    %v57 = vld [vmem:[#allocation2 + $0x8] sm:$0xff]
    %v58 = vld [vmem:[#allocation2 + $0x10] sm:$0xff]
    %v59 = vld [vmem:[#allocation2 + $0x18] sm:$0xff]
    %v60 = vld [vmem:[#allocation5] sm:$0xff]
    %v61 = vld [vmem:[#allocation5 + $0x8] sm:$0xff]
    %v62 = vld [vmem:[#allocation5 + $0x10] sm:$0xff]
    %v63 = vld [vmem:[#allocation5 + $0x18] sm:$0xff]
    %v64 = vld [vmem:[#allocation7] sm:$0xff]
    %v65 = vld [vmem:[#allocation7 + $0x8] sm:$0xff]
    %v66 = vld [vmem:[#allocation7 + $0x10] sm:$0xff]
    %v67 = vld [vmem:[#allocation7 + $0x18] sm:$0xff]
    %v68 = vsub.f32 %v56, %v60
    %v69 = vsub.f32 %v57, %v61
    %v70 = vsub.f32 %v58, %v62
    %v71 = vsub.f32 %v59, %v63
    %v72 = vadd.f32 %v68, 1e-06
    %v73 = vadd.f32 %v69, 1e-06
    %v74 = vadd.f32 %v70, 1e-06
    %v75 = vadd.f32 %v71, 1e-06
    %v76 = vsub.f32 %v56, %v64
    %v77 = vsub.f32 %v57, %v65
    %v78 = vsub.f32 %v58, %v66
    %v79 = vsub.f32 %v59, %v67
    %v80 = vadd.f32 %v76, 1e-06
    %v81 = vadd.f32 %v77, 1e-06
    %v82 = vadd.f32 %v78, 1e-06
    %v83 = vadd.f32 %v79, 1e-06
    %v84 = vmul.f32 %v72, %v72
    %v85 = vmul.f32 %v73, %v73
    %v86 = vmul.f32 %v74, %v74
    %v87 = vmul.f32 %v75, %v75
    %88 = vadd.xlane.f32.xlu0 %v84
    %v89 = vpop.xlane.xlu0 %88
    %90 = vadd.xlane.f32.xlu0 %v85
    %v91 = vpop.xlane.xlu0 %90
    %92 = vadd.xlane.f32.xlu0 %v86
    %v93 = vpop.xlane.xlu0 %92
    %94 = vadd.xlane.f32.xlu0 %v87
    %v95 = vpop.xlane.xlu0 %94
    %v96 = vrsqrt.pop %v89
    %v97 = vmul.f32 %v89, %v96
    %vm98 = vcmp.eq.f32.partialorder %v89, inf
    %v99 = vsel %vm98, %v89, %v97
    %vm100 = vcmp.eq.f32.partialorder %v89, 0.0
    %v101 = vand.u32 %v89, 2147483648
    %v102 = vsel %vm100, %v101, %v99
    %v103 = vrsqrt.pop %v91
    %v104 = vmul.f32 %v91, %v103
    %vm105 = vcmp.eq.f32.partialorder %v91, inf
    %v106 = vsel %vm105, %v91, %v104
    %vm107 = vcmp.eq.f32.partialorder %v91, 0.0
    %v108 = vand.u32 %v91, 2147483648
    %v109 = vsel %vm107, %v108, %v106
    %v110 = vrsqrt.pop %v93
    %v111 = vmul.f32 %v93, %v110
    %vm112 = vcmp.eq.f32.partialorder %v93, inf
    %v113 = vsel %vm112, %v93, %v111
    %vm114 = vcmp.eq.f32.partialorder %v93, 0.0
    %v115 = vand.u32 %v93, 2147483648
    %v116 = vsel %vm114, %v115, %v113
    %v117 = vrsqrt.pop %v95
    %v118 = vmul.f32 %v95, %v117
    %vm119 = vcmp.eq.f32.partialorder %v95, inf
    %v120 = vsel %vm119, %v95, %v118
    %vm121 = vcmp.eq.f32.partialorder %v95, 0.0
    %v122 = vand.u32 %v95, 2147483648
    %v123 = vsel %vm121, %v122, %v120
    %v124 = vmul.f32 %v80, %v80
    %v125 = vmul.f32 %v81, %v81
    %v126 = vmul.f32 %v82, %v82
    %v127 = vmul.f32 %v83, %v83
    %128 = vadd.xlane.f32.xlu0 %v124
    %v129 = vpop.xlane.xlu0 %128
    %130 = vadd.xlane.f32.xlu0 %v125
    %v131 = vpop.xlane.xlu0 %130
    %132 = vadd.xlane.f32.xlu0 %v126
    %v133 = vpop.xlane.xlu0 %132
    %134 = vadd.xlane.f32.xlu0 %v127
    %v135 = vpop.xlane.xlu0 %134
    %v136 = vrsqrt.pop %v129
    %v137 = vmul.f32 %v129, %v136
    %vm138 = vcmp.eq.f32.partialorder %v129, inf
    %v139 = vsel %vm138, %v129, %v137
    %vm140 = vcmp.eq.f32.partialorder %v129, 0.0
    %v141 = vand.u32 %v129, 2147483648
    %v142 = vsel %vm140, %v141, %v139
    %v143 = vrsqrt.pop %v131
    %v144 = vmul.f32 %v131, %v143
    %vm145 = vcmp.eq.f32.partialorder %v131, inf
    %v146 = vsel %vm145, %v131, %v144
    %vm147 = vcmp.eq.f32.partialorder %v131, 0.0
    %v148 = vand.u32 %v131, 2147483648
    %v149 = vsel %vm147, %v148, %v146
    %v150 = vrsqrt.pop %v133
    %v151 = vmul.f32 %v133, %v150
    %vm152 = vcmp.eq.f32.partialorder %v133, inf
    %v153 = vsel %vm152, %v133, %v151
    %vm154 = vcmp.eq.f32.partialorder %v133, 0.0
    %v155 = vand.u32 %v133, 2147483648
    %v156 = vsel %vm154, %v155, %v153
    %v157 = vrsqrt.pop %v135
    %v158 = vmul.f32 %v135, %v157
    %vm159 = vcmp.eq.f32.partialorder %v135, inf
    %v160 = vsel %vm159, %v135, %v158
    %vm161 = vcmp.eq.f32.partialorder %v135, 0.0
    %v162 = vand.u32 %v135, 2147483648
    %v163 = vsel %vm161, %v162, %v160
    %v164 = vadd.f32 %v102, 0.2
    %v165 = vadd.f32 %v109, 0.2
    %v166 = vadd.f32 %v116, 0.2
    %v167 = vadd.f32 %v123, 0.2
    %v168 = vsub.f32 %v164, %v142
    %v169 = vsub.f32 %v165, %v149
    %v170 = vsub.f32 %v166, %v156
    %v171 = vsub.f32 %v167, %v163
    %v172 = vmax.f32 %v168, 0.0
    %v173 = vmax.f32 %v169, 0.0
    %v174 = vmax.f32 %v170, 0.0
    %v175 = vmax.f32 %v171, 0.0
    %176 = vst [vmem:[#allocation8] sm:$0x1] 0.0
    %v181 = vlaneseq
    %v182 = vand.u32 %v181, 127
    %v183 = vlaneseq
    %v184 = vshrl.u32 %v183, 7
    %v185 = vsub.s32 %v182, %v184
    %v186 = vrot.slane %v172, %v185
    %v187 = vadd.s32 %v182, 4294967288
    %v188 = vlaneseq
    %v189 = vshrl.u32 %v188, 7
    %v190 = vsub.s32 %v187, %v189
    %v191 = vrot.slane %v173, %v190
    %vm192 = vcmask 130112
    %v193 = vsel %vm192, %v191, %v186
    %v194 = vadd.s32 %v182, 4294967280
    %v195 = vlaneseq
    %v196 = vshrl.u32 %v195, 7
    %v197 = vsub.s32 %v194, %v196
    %v198 = vrot.slane %v174, %v197
    %vm199 = vcmask 195712
    %v200 = vsel %vm199, %v198, %v193
    %v201 = vadd.s32 %v182, 4294967272
    %v202 = vlaneseq
    %v203 = vshrl.u32 %v202, 7
    %v204 = vsub.s32 %v201, %v203
    %v205 = vrot.slane %v175, %v204
    %vm206 = vcmask 261312
    %v207 = vsel %vm206, %v205, %v200
    %vm209 = vcmask 253952
    %210 = vst.msk [vmem:[#allocation8] sm:$0x1] %vm209, %v207
    // Predicated region
    $region26: #{tpu_custom_call.1} parent=1 // pred_check
      _
    $region27: #{tpu_custom_call.1} parent=1 // pred_check_branch
      %212 = sbr.rel (0) target = $region29
    $region28: #{tpu_custom_call.1} parent=1 // pred_region
      %s214 = ssub.s32 16, 16
      %215 = vsyncadd [#allocation4], %s214
      %s217 = sshll.u32 [#allocation8], 4
      %s218 = int_to_ptr.vmem [resolvable:$true] %s217
      %220 = dma.vmem_to_hbm [thread:$0]  %s218, 16, %s3, [#allocation4]
    $region29: #{tpu_custom_call.1} parent=1 // pred_fallthru
      _
    // Predicated region
    $region30: #{tpu_custom_call.1} parent=1 // pred_check
      _
    $region31: #{tpu_custom_call.1} parent=1 // pred_check_branch
      %222 = sbr.rel (0) target = $region33
    $region32: #{tpu_custom_call.1} parent=1 // pred_region
      %223 = dma.done [#allocation4], 16
    $region33: #{tpu_custom_call.1} parent=1 // pred_fallthru
      _
    %224 = vsyncpa [#allocation3], 1
    %225 = vsyncpa [#allocation6], 1
    %226 = vsyncpa [#allocation4], 1

</llo_original>
